<compile_context>
chip_gen: v7x
topology: tpu7x:2x2x1
jax: 0.10.0
libtpu: 0.0.40
codegen_flags: <defaults>
</compile_context>

<pallas_src>
import jax
import jax.numpy as jnp
from jax.experimental import pallas as pl
from jax.experimental.pallas import tpu as pltpu

IN_DIM = 2       # (x, t) collocation coordinates
HIDDEN = 32
OUT_DIM = 1      # pressure p
BATCH = 64
LANE = 128       # TPU lane width; batch is padded to a multiple of this
MAX_TILE_N = 2048


def _mlp_kernel(x_ref,
                w0_ref, b0_ref,
                w1_ref, b1_ref,
                w2_ref, b2_ref,
                w3_ref, b3_ref,
                o_ref):
    """Whole MLP forward for one batch tile, batch on the lane axis.

    Shapes: x (IN_DIM, TILE_N); wK (out, in); bK (out, 1); o (OUT_DIM, TILE_N).
    """
    x = x_ref[...]                                   # (IN_DIM, TILE_N)
    w0 = w0_ref[...]                                 # (HIDDEN, IN_DIM)

    # Layer 0: K=2 contraction -> two broadcast FMAs on the VPU (skip the MXU).
    h = w0[:, 0:1] * x[0:1, :] + w0[:, 1:2] * x[1:2, :] + b0_ref[...]
    h = jnp.tanh(h)                                  # (HIDDEN, TILE_N)

    # 32x32 hidden layers on the MXU, f32 accumulation.
    h = jnp.tanh(jnp.dot(w1_ref[...], h,
                         preferred_element_type=jnp.float32) + b1_ref[...])
    h = jnp.tanh(jnp.dot(w2_ref[...], h,
                         preferred_element_type=jnp.float32) + b2_ref[...])

    # Linear head -> lane-dense (1, TILE_N) output.
    y = jnp.dot(w3_ref[...], h,
                preferred_element_type=jnp.float32) + b3_ref[...]
    o_ref[...] = y.astype(o_ref.dtype)


def dnn_forward(x, params, *, max_tile_n=MAX_TILE_N):
    """DNN.forward(x) == self.net(x); the PINN MLP evaluated in Pallas.

    x: (N, IN_DIM) float32.  params: list of (w, b) with w (in, out), b (1, out)
    (torch.nn.Linear semantics: y = x @ w + b).  Returns (N, OUT_DIM) float32.
    """
    (w0, b0), (w1, b1), (w2, b2), (w3, b3) = params
    n = x.shape[0]

    # Pad the batch up to a lane-aligned multiple of the tile size.
    n_pad = ((max(n, LANE) + LANE - 1) // LANE) * LANE
    tile_n = min(max_tile_n, n_pad)
    n_pad = ((n_pad + tile_n - 1) // tile_n) * tile_n
    grid = (n_pad // tile_n,)

    # Batch on the lane (last) axis; pad with zeros (padded lanes are sliced off).
    xt = jnp.zeros((IN_DIM, n_pad), x.dtype).at[:, :n].set(x.T)

    # Transposed parameters: (out, in) weights, (out, 1) biases.
    w0t, w1t, w2t, w3t = w0.T, w1.T, w2.T, w3.T
    b0t, b1t, b2t, b3t = b0.T, b1.T, b2.T, b3.T

    def const_block(shape):
        # Whole (tiny) array resident in VMEM; same block for every grid step.
        return pl.BlockSpec(shape, lambda i: tuple(0 for _ in shape))

    # Advisory cost estimate for XLA scheduling when embedded in the PINN loss.
    flops_per_row = 2 * (IN_DIM * HIDDEN + 2 * HIDDEN * HIDDEN
                         + HIDDEN * OUT_DIM) + 3 * HIDDEN + OUT_DIM
    weight_bytes = 4 * (IN_DIM * HIDDEN + 2 * HIDDEN * HIDDEN
                        + HIDDEN * OUT_DIM + 3 * HIDDEN + OUT_DIM)
    cost = pl.CostEstimate(
        flops=flops_per_row * n_pad,
        transcendentals=3 * HIDDEN * n_pad,
        bytes_accessed=4 * (IN_DIM + OUT_DIM) * n_pad + weight_bytes,
    )

    out = pl.pallas_call(
        _mlp_kernel,
        out_shape=jax.ShapeDtypeStruct((OUT_DIM, n_pad), jnp.float32),
        grid_spec=pltpu.PrefetchScalarGridSpec(
            num_scalar_prefetch=0,
            grid=grid,
            in_specs=[
                pl.BlockSpec((IN_DIM, tile_n), lambda i: (0, i)),   # x tile
                const_block(w0t.shape), const_block(b0t.shape),
                const_block(w1t.shape), const_block(b1t.shape),
                const_block(w2t.shape), const_block(b2t.shape),
                const_block(w3t.shape), const_block(b3t.shape),
            ],
            out_specs=pl.BlockSpec((OUT_DIM, tile_n), lambda i: (0, i)),
        ),
        compiler_params=pltpu.CompilerParams(
            dimension_semantics=("parallel",)),      # megacore split on v7x
        cost_estimate=cost,
    )(xt, w0t, b0t, w1t, b1t, w2t, b2t, w3t, b3t)

    return out[:, :n].T                               # (N, OUT_DIM)


def init_params(key):
    """Deterministic synthetic weights (torch.nn.Linear-like uniform init)."""
    dims = [IN_DIM, HIDDEN, HIDDEN, HIDDEN, OUT_DIM]
    params = []
    for din, dout in zip(dims[:-1], dims[1:]):
        kw, kb, key = jax.random.split(key, 3)
        bound = 1.0 / jnp.sqrt(din)
        w = jax.random.uniform(kw, (din, dout), jnp.float32, -bound, bound)
        b = jax.random.uniform(kb, (1, dout), jnp.float32, -bound, bound)
        params.append((w, b))
    return params


def ref_forward(x, params):
    h = x
    for li, (w, b) in enumerate(params):
        h = h @ w + b
        if li < len(params) - 1:
            h = jnp.tanh(h)
    return h


if __name__ == "__main__":
    key = jax.random.PRNGKey(0)
    kx, kx2, kp = jax.random.split(key, 3)

    # Inverse-problem scalar parameters (registered on the module; unused in forward()).
    G, glad, mu_h = jnp.float32(0.5), jnp.float32(0.1), jnp.float32(1.0)
    _ = (G, glad, mu_h)
    # TODO(synk): loss_data/loss_pde/loss_operator need autograd of net wrt x
    # (torch.autograd.grad), mu_oil, SciPy interpolation and matplotlib side
    # effects; only forward() is implemented as a Pallas kernel here.

    params = init_params(kp)

    # Small demo batch (pads 64 -> 128 lanes, single grid step).
    x = jax.random.uniform(kx, (BATCH, IN_DIM), jnp.float32)
    y = jax.block_until_ready(dnn_forward(x, params))
    y_ref = ref_forward(x, params)
    assert y.shape == (BATCH, OUT_DIM)
    assert jnp.allclose(y, y_ref, atol=1e-5, rtol=1e-5)

    # Ragged batch exercising padding + multi-tile grid path.
    x2 = jax.random.uniform(kx2, (200, IN_DIM), jnp.float32)
    y2 = jax.block_until_ready(dnn_forward(x2, params, max_tile_n=128))
    y2_ref = ref_forward(x2, params)
    assert y2.shape == (200, OUT_DIM)
    assert jnp.allclose(y2, y2_ref, atol=1e-5, rtol=1e-5)

    print("KERNEL_OK")
</pallas_src>

<mosaic_0001>
module attributes {stable_mosaic.version = 11 : i64} {
  func.func @_mlp_kernel(%arg0: i32, %arg1: memref<2x128xf32, #tpu.memory_space<vmem>>, %arg2: memref<32x2xf32, #tpu.memory_space<vmem>>, %arg3: memref<32x1xf32, #tpu.memory_space<vmem>>, %arg4: memref<32x32xf32, #tpu.memory_space<vmem>>, %arg5: memref<32x1xf32, #tpu.memory_space<vmem>>, %arg6: memref<32x32xf32, #tpu.memory_space<vmem>>, %arg7: memref<32x1xf32, #tpu.memory_space<vmem>>, %arg8: memref<1x32xf32, #tpu.memory_space<vmem>>, %arg9: memref<1x1xf32, #tpu.memory_space<vmem>>, %arg10: memref<1x128xf32, #tpu.memory_space<vmem>>) attributes {dimension_semantics = [#tpu.dimension_semantics<parallel>], iteration_bounds = array<i64: 1>, scalar_prefetch = 0 : i64, scratch_operands = 0 : i64, tpu.core_type = #tpu.core_type<tc>, window_params = [{transform_indices = @transform_0, window_bounds = array<i64: 2, 128>}, {pipeline_mode = #tpu.pipeline_mode<synchronous>, transform_indices = @transform_1, window_bounds = array<i64: 32, 2>}, {pipeline_mode = #tpu.pipeline_mode<synchronous>, transform_indices = @transform_2, window_bounds = array<i64: 32, 1>}, {pipeline_mode = #tpu.pipeline_mode<synchronous>, transform_indices = @transform_3, window_bounds = array<i64: 32, 32>}, {pipeline_mode = #tpu.pipeline_mode<synchronous>, transform_indices = @transform_4, window_bounds = array<i64: 32, 1>}, {pipeline_mode = #tpu.pipeline_mode<synchronous>, transform_indices = @transform_5, window_bounds = array<i64: 32, 32>}, {pipeline_mode = #tpu.pipeline_mode<synchronous>, transform_indices = @transform_6, window_bounds = array<i64: 32, 1>}, {pipeline_mode = #tpu.pipeline_mode<synchronous>, transform_indices = @transform_7, window_bounds = array<i64: 1, 32>}, {pipeline_mode = #tpu.pipeline_mode<synchronous>, transform_indices = @transform_8, window_bounds = array<i64: 1, 1>}, {transform_indices = @transform_9, window_bounds = array<i64: 1, 128>}]} {
    %c0 = arith.constant 0 : index
    %c0_0 = arith.constant 0 : index
    %0 = vector.load %arg1[%c0, %c0_0] : memref<2x128xf32, #tpu.memory_space<vmem>>, vector<2x128xf32>
    %c0_1 = arith.constant 0 : index
    %c0_2 = arith.constant 0 : index
    %1 = vector.load %arg2[%c0_1, %c0_2] : memref<32x2xf32, #tpu.memory_space<vmem>>, vector<32x2xf32>
    %2 = vector.extract_strided_slice %1 {offsets = [0, 0], sizes = [32, 1], strides = [1, 1]} : vector<32x2xf32> to vector<32x1xf32>
    %3 = vector.extract_strided_slice %0 {offsets = [0, 0], sizes = [1, 128], strides = [1, 1]} : vector<2x128xf32> to vector<1x128xf32>
    %4 = vector.broadcast %2 : vector<32x1xf32> to vector<32x128xf32>
    %5 = vector.broadcast %3 : vector<1x128xf32> to vector<32x128xf32>
    %6 = arith.mulf %4, %5 : vector<32x128xf32>
    %7 = vector.extract_strided_slice %1 {offsets = [0, 1], sizes = [32, 1], strides = [1, 1]} : vector<32x2xf32> to vector<32x1xf32>
    %8 = vector.extract_strided_slice %0 {offsets = [1, 0], sizes = [1, 128], strides = [1, 1]} : vector<2x128xf32> to vector<1x128xf32>
    %9 = vector.broadcast %7 : vector<32x1xf32> to vector<32x128xf32>
    %10 = vector.broadcast %8 : vector<1x128xf32> to vector<32x128xf32>
    %11 = arith.mulf %9, %10 : vector<32x128xf32>
    %12 = arith.addf %6, %11 : vector<32x128xf32>
    %c0_3 = arith.constant 0 : index
    %c0_4 = arith.constant 0 : index
    %13 = vector.load %arg3[%c0_3, %c0_4] : memref<32x1xf32, #tpu.memory_space<vmem>>, vector<32x1xf32>
    %14 = vector.broadcast %13 : vector<32x1xf32> to vector<32x128xf32>
    %15 = arith.addf %12, %14 : vector<32x128xf32>
    %16 = math.tanh %15 : vector<32x128xf32>
    %c0_5 = arith.constant 0 : index
    %c0_6 = arith.constant 0 : index
    %17 = vector.load %arg4[%c0_5, %c0_6] : memref<32x32xf32, #tpu.memory_space<vmem>>, vector<32x32xf32>
    %cst = arith.constant dense<0.000000e+00> : vector<32x128xf32>
    %18 = tpu.matmul %17, %16, %cst {dimension_numbers = #tpu.dot_dimension_numbers<[1], [0], [0], [1], [0, 0, 1, 1], [], []>} : vector<32x32xf32>, vector<32x128xf32>, vector<32x128xf32> -> vector<32x128xf32>
    %c0_7 = arith.constant 0 : index
    %c0_8 = arith.constant 0 : index
    %19 = vector.load %arg5[%c0_7, %c0_8] : memref<32x1xf32, #tpu.memory_space<vmem>>, vector<32x1xf32>
    %20 = vector.broadcast %19 : vector<32x1xf32> to vector<32x128xf32>
    %21 = arith.addf %18, %20 : vector<32x128xf32>
    %22 = math.tanh %21 : vector<32x128xf32>
    %c0_9 = arith.constant 0 : index
    %c0_10 = arith.constant 0 : index
    %23 = vector.load %arg6[%c0_9, %c0_10] : memref<32x32xf32, #tpu.memory_space<vmem>>, vector<32x32xf32>
    %cst_11 = arith.constant dense<0.000000e+00> : vector<32x128xf32>
    %24 = tpu.matmul %23, %22, %cst_11 {dimension_numbers = #tpu.dot_dimension_numbers<[1], [0], [0], [1], [0, 0, 1, 1], [], []>} : vector<32x32xf32>, vector<32x128xf32>, vector<32x128xf32> -> vector<32x128xf32>
    %c0_12 = arith.constant 0 : index
    %c0_13 = arith.constant 0 : index
    %25 = vector.load %arg7[%c0_12, %c0_13] : memref<32x1xf32, #tpu.memory_space<vmem>>, vector<32x1xf32>
    %26 = vector.broadcast %25 : vector<32x1xf32> to vector<32x128xf32>
    %27 = arith.addf %24, %26 : vector<32x128xf32>
    %28 = math.tanh %27 : vector<32x128xf32>
    %c0_14 = arith.constant 0 : index
    %c0_15 = arith.constant 0 : index
    %29 = vector.load %arg8[%c0_14, %c0_15] : memref<1x32xf32, #tpu.memory_space<vmem>>, vector<1x32xf32>
    %cst_16 = arith.constant dense<0.000000e+00> : vector<1x128xf32>
    %30 = tpu.matmul %29, %28, %cst_16 {dimension_numbers = #tpu.dot_dimension_numbers<[1], [0], [0], [1], [0, 0, 1, 1], [], []>} : vector<1x32xf32>, vector<32x128xf32>, vector<1x128xf32> -> vector<1x128xf32>
    %c0_17 = arith.constant 0 : index
    %c0_18 = arith.constant 0 : index
    %31 = vector.load %arg9[%c0_17, %c0_18] : memref<1x1xf32, #tpu.memory_space<vmem>>, vector<1x1xf32>
    %32 = vector.broadcast %31 : vector<1x1xf32> to vector<1x128xf32>
    %33 = arith.addf %30, %32 : vector<1x128xf32>
    %c0_19 = arith.constant 0 : index
    %c0_20 = arith.constant 0 : index
    %34 = vector.load %arg10[%c0_19, %c0_20] : memref<1x128xf32, #tpu.memory_space<vmem>>, vector<1x128xf32>
    tpu.vector_store %arg10[%c0_19, %c0_20], %33 {strides = array<i32>} : memref<1x128xf32, #tpu.memory_space<vmem>>, vector<1x128xf32>,
    return
  }
  func.func @transform_0(%arg0: i32) -> (i32, i32) {
    %c0_i32 = arith.constant 0 : i32
    %c0_i32_0 = arith.constant 0 : i32
    return %c0_i32, %arg0 : i32, i32
  }
  func.func @transform_1(%arg0: i32) -> (i32, i32) {
    %c0_i32 = arith.constant 0 : i32
    %c0_i32_0 = arith.constant 0 : i32
    %c0_i32_1 = arith.constant 0 : i32
    return %c0_i32, %c0_i32_0 : i32, i32
  }
  func.func @transform_2(%arg0: i32) -> (i32, i32) {
    %c0_i32 = arith.constant 0 : i32
    %c0_i32_0 = arith.constant 0 : i32
    %c0_i32_1 = arith.constant 0 : i32
    return %c0_i32, %c0_i32_0 : i32, i32
  }
  func.func @transform_3(%arg0: i32) -> (i32, i32) {
    %c0_i32 = arith.constant 0 : i32
    %c0_i32_0 = arith.constant 0 : i32
    %c0_i32_1 = arith.constant 0 : i32
    return %c0_i32, %c0_i32_0 : i32, i32
  }
  func.func @transform_4(%arg0: i32) -> (i32, i32) {
    %c0_i32 = arith.constant 0 : i32
    %c0_i32_0 = arith.constant 0 : i32
    %c0_i32_1 = arith.constant 0 : i32
    return %c0_i32, %c0_i32_0 : i32, i32
  }
  func.func @transform_5(%arg0: i32) -> (i32, i32) {
    %c0_i32 = arith.constant 0 : i32
    %c0_i32_0 = arith.constant 0 : i32
    %c0_i32_1 = arith.constant 0 : i32
    return %c0_i32, %c0_i32_0 : i32, i32
  }
  func.func @transform_6(%arg0: i32) -> (i32, i32) {
    %c0_i32 = arith.constant 0 : i32
    %c0_i32_0 = arith.constant 0 : i32
    %c0_i32_1 = arith.constant 0 : i32
    return %c0_i32, %c0_i32_0 : i32, i32
  }
  func.func @transform_7(%arg0: i32) -> (i32, i32) {
    %c0_i32 = arith.constant 0 : i32
    %c0_i32_0 = arith.constant 0 : i32
    %c0_i32_1 = arith.constant 0 : i32
    return %c0_i32, %c0_i32_0 : i32, i32
  }
  func.func @transform_8(%arg0: i32) -> (i32, i32) {
    %c0_i32 = arith.constant 0 : i32
    %c0_i32_0 = arith.constant 0 : i32
    %c0_i32_1 = arith.constant 0 : i32
    return %c0_i32, %c0_i32_0 : i32, i32
  }
  func.func @transform_9(%arg0: i32) -> (i32, i32) {
    %c0_i32 = arith.constant 0 : i32
    %c0_i32_0 = arith.constant 0 : i32
    return %c0_i32, %arg0 : i32, i32
  }
}

</mosaic_0001>

<llo_original>
// kernel: tpu_custom_call.1
$region0: #{tpu_custom_call.1}
  #allocation0 [shape = 'u32[]', space=smem, size = 0x4, offset = 0x4, fixed_abs, tag = 'smem constant byte address 0x4 - core index']
  #allocation1 [shape = 'u32[144,128]{1,0:T(1,128)}', space=vmem, size = 0x12000, scoped, tag = 'internal scratch']
  #allocation2 [shape = 'f32[1,1]{1,0:T(1,128)S(1)}', space=vmem, size = 0x200, scoped, tag = 'scoped memory for tpu_custom_call.1']
  %s0 = inlined_call_operand.vmem [shape: f32[2,128], index: 0, kind: input, shape index: {}]
  %s1 = inlined_call_operand.vmem [shape: f32[32,2], index: 1, kind: input, shape index: {}]
  %s2 = inlined_call_operand.vmem [shape: f32[32,1], index: 2, kind: input, shape index: {}]
  %s3 = inlined_call_operand.vmem [shape: f32[32,32], index: 3, kind: input, shape index: {}]
  %s4 = inlined_call_operand.vmem [shape: f32[32,1], index: 4, kind: input, shape index: {}]
  %s5 = inlined_call_operand.vmem [shape: f32[32,32], index: 5, kind: input, shape index: {}]
  %s6 = inlined_call_operand.vmem [shape: f32[32,1], index: 6, kind: input, shape index: {}]
  %s7 = inlined_call_operand.vmem [shape: f32[1,32], index: 7, kind: input, shape index: {}]
  %s8 = inlined_call_operand.<no memory space> [shape: f32[1,1], index: 8, kind: input, shape index: {}]
  %s9 = inlined_call_operand.hbm [shape: f32[1,128], index: 9, kind: output, shape index: {}]
  %s10 = sld [smem:[#allocation0]]
  $region46: #{tpu_custom_call.1} parent=0
    _
  %s12 = ssub.s32 1, %s10
  %s13 = scalar_select 0, %s12, %s10
  %v14 = vstv %s8
  %15 = vst [vmem:[#allocation2] sm:$0x1] %v14
  $region1: #{tpu_custom_call.1} parent=0
    #allocation3 [shape = 'u8[512]{0}', space=vmem, size = 0x400, scoped, tag = 'output window, operand 0, single buffered']
    #allocation4 [shape = 's32[1]{0}', space=sflag, size = 0x4, scoped, tag = 'scoped memory for tpu_custom_call.1']
    %16 = vsyncpa [#allocation4], 0
    // Predicated region
    $region2: #{tpu_custom_call.1} parent=1 // pred_check
      _
    $region3: #{tpu_custom_call.1} parent=1 // pred_check_branch
      %18 = sbr.rel (0) target = $region5
    $region4: #{tpu_custom_call.1} parent=1 // pred_region
      _
    $region5: #{tpu_custom_call.1} parent=1 // pred_fallthru
      _
    // Predicated region
    $region6: #{tpu_custom_call.1} parent=1 // pred_check
      _
    $region7: #{tpu_custom_call.1} parent=1 // pred_check_branch
      %20 = sbr.rel (0) target = $region9
    $region8: #{tpu_custom_call.1} parent=1 // pred_region
      _
    $region9: #{tpu_custom_call.1} parent=1 // pred_fallthru
      _
    // Predicated region
    $region10: #{tpu_custom_call.1} parent=1 // pred_check
      _
    $region11: #{tpu_custom_call.1} parent=1 // pred_check_branch
      %22 = sbr.rel (0) target = $region13
    $region12: #{tpu_custom_call.1} parent=1 // pred_region
      _
    $region13: #{tpu_custom_call.1} parent=1 // pred_fallthru
      _
    // Predicated region
    $region14: #{tpu_custom_call.1} parent=1 // pred_check
      _
    $region15: #{tpu_custom_call.1} parent=1 // pred_check_branch
      %24 = sbr.rel (0) target = $region17
    $region16: #{tpu_custom_call.1} parent=1 // pred_region
      _
    $region17: #{tpu_custom_call.1} parent=1 // pred_fallthru
      _
    // Predicated region
    $region18: #{tpu_custom_call.1} parent=1 // pred_check
      _
    $region19: #{tpu_custom_call.1} parent=1 // pred_check_branch
      %26 = sbr.rel (0) target = $region21
    $region20: #{tpu_custom_call.1} parent=1 // pred_region
      _
    $region21: #{tpu_custom_call.1} parent=1 // pred_fallthru
      _
    // Predicated region
    $region22: #{tpu_custom_call.1} parent=1 // pred_check
      _
    $region23: #{tpu_custom_call.1} parent=1 // pred_check_branch
      %28 = sbr.rel (0) target = $region25
    $region24: #{tpu_custom_call.1} parent=1 // pred_region
      _
    $region25: #{tpu_custom_call.1} parent=1 // pred_fallthru
      _
    // Predicated region
    $region26: #{tpu_custom_call.1} parent=1 // pred_check
      _
    $region27: #{tpu_custom_call.1} parent=1 // pred_check_branch
      %30 = sbr.rel (0) target = $region29
    $region28: #{tpu_custom_call.1} parent=1 // pred_region
      _
    $region29: #{tpu_custom_call.1} parent=1 // pred_fallthru
      _
    // Predicated region
    $region30: #{tpu_custom_call.1} parent=1 // pred_check
      _
    $region31: #{tpu_custom_call.1} parent=1 // pred_check_branch
      %32 = sbr.rel (0) target = $region33
    $region32: #{tpu_custom_call.1} parent=1 // pred_region
      _
    $region33: #{tpu_custom_call.1} parent=1 // pred_fallthru
      _
    // Predicated region
    $region34: #{tpu_custom_call.1} parent=1 // pred_check
      _
    $region35: #{tpu_custom_call.1} parent=1 // pred_check_branch
      %34 = sbr.rel (0) target = $region37
    $region36: #{tpu_custom_call.1} parent=1 // pred_region
      _
    $region37: #{tpu_custom_call.1} parent=1 // pred_fallthru
      _
    %v35 = vld [vmem:[%s0] sm:$0x3]
    %v36 = vld [vmem:[%s1] sm:$0xff]
    %v37 = vld [vmem:[%s1 + $0x8] sm:$0xff]
    %v38 = vld [vmem:[%s1 + $0x10] sm:$0xff]
    %v39 = vld [vmem:[%s1 + $0x18] sm:$0xff]
    %41 = vset.pattern.permute.xlu0 0
    %42 = vperm.xlu0 %41, %v36
    %v43 = vpop.permute.xlu0 %42
    %46 = vset.pattern.permute.xlu0 0
    %47 = vperm.xlu0 %46, %v37
    %v48 = vpop.permute.xlu0 %47
    %51 = vset.pattern.permute.xlu0 0
    %52 = vperm.xlu0 %51, %v38
    %v53 = vpop.permute.xlu0 %52
    %56 = vset.pattern.permute.xlu0 0
    %57 = vperm.xlu0 %56, %v39
    %v58 = vpop.permute.xlu0 %57
    %v60 = vlaneseq
    %v61 = vshrl.u32 %v60, 7
    %v62 = vsub.s32 0, %v61
    %v63 = vrot.slane %v35, %v62
    %v64 = vmul.f32 %v43, %v63
    %v65 = vmul.f32 %v48, %v63
    %v66 = vmul.f32 %v53, %v63
    %v67 = vmul.f32 %v58, %v63
    %68 = vset.pattern.permute.xlu0 1
    %69 = vperm.xlu0 %68, %v36
    %v70 = vpop.permute.xlu0 %69
    %72 = vset.pattern.permute.xlu0 1
    %73 = vperm.xlu0 %72, %v37
    %v74 = vpop.permute.xlu0 %73
    %76 = vset.pattern.permute.xlu0 1
    %77 = vperm.xlu0 %76, %v38
    %v78 = vpop.permute.xlu0 %77
    %80 = vset.pattern.permute.xlu0 1
    %81 = vperm.xlu0 %80, %v39
    %v82 = vpop.permute.xlu0 %81
    %v84 = vlaneseq
    %v85 = vshrl.u32 %v84, 7
    %v86 = vsub.s32 1, %v85
    %v87 = vrot.slane %v35, %v86
    %v88 = vmul.f32 %v70, %v87
    %v89 = vmul.f32 %v74, %v87
    %v90 = vmul.f32 %v78, %v87
    %v91 = vmul.f32 %v82, %v87
    %v92 = vadd.f32 %v64, %v88
    %v93 = vadd.f32 %v65, %v89
    %v94 = vadd.f32 %v66, %v90
    %v95 = vadd.f32 %v67, %v91
    %v96 = vld [vmem:[%s2] sm:$0xff]
    %v97 = vld [vmem:[%s2 + $0x8] sm:$0xff]
    %v98 = vld [vmem:[%s2 + $0x10] sm:$0xff]
    %v99 = vld [vmem:[%s2 + $0x18] sm:$0xff]
    %101 = vset.pattern.permute.xlu0 0
    %102 = vperm.xlu0 %101, %v96
    %v103 = vpop.permute.xlu0 %102
    %106 = vset.pattern.permute.xlu0 0
    %107 = vperm.xlu0 %106, %v97
    %v108 = vpop.permute.xlu0 %107
    %111 = vset.pattern.permute.xlu0 0
    %112 = vperm.xlu0 %111, %v98
    %v113 = vpop.permute.xlu0 %112
    %116 = vset.pattern.permute.xlu0 0
    %117 = vperm.xlu0 %116, %v99
    %v118 = vpop.permute.xlu0 %117
    %v120 = vadd.f32 %v92, %v103
    %v121 = vadd.f32 %v93, %v108
    %v122 = vadd.f32 %v94, %v113
    %v123 = vadd.f32 %v95, %v118
    %v124 = vtanh.pop %v120
    %v125 = vtanh.pop %v121
    %v126 = vtanh.pop %v122
    %v127 = vtanh.pop %v123
    %v128 = vld [vmem:[%s3] sm:$0xff]
    %v129 = vld [vmem:[%s3 + $0x8] sm:$0xff]
    %v130 = vld [vmem:[%s3 + $0x10] sm:$0xff]
    %v131 = vld [vmem:[%s3 + $0x18] sm:$0xff]
    %v132 = vld [vmem:[%s4] sm:$0xff]
    %v133 = vld [vmem:[%s4 + $0x8] sm:$0xff]
    %v134 = vld [vmem:[%s4 + $0x10] sm:$0xff]
    %v135 = vld [vmem:[%s4 + $0x18] sm:$0xff]
    %137 = vset.pattern.permute.xlu0 0
    %138 = vperm.xlu0 %137, %v132
    %v139 = vpop.permute.xlu0 %138
    %142 = vset.pattern.permute.xlu0 0
    %143 = vperm.xlu0 %142, %v133
    %v144 = vpop.permute.xlu0 %143
    %147 = vset.pattern.permute.xlu0 0
    %148 = vperm.xlu0 %147, %v134
    %v149 = vpop.permute.xlu0 %148
    %152 = vset.pattern.permute.xlu0 0
    %153 = vperm.xlu0 %152, %v135
    %v154 = vpop.permute.xlu0 %153
    %vm156 = vcmask 261120
    %v158 = vsel %vm156, %v128, 0
    %v161 = vsel %vm156, %v129, 0
    %v164 = vsel %vm156, %v130, 0
    %v167 = vsel %vm156, %v131, 0
    %169 = vmatprep.subr.mxu0 0.0
    %170 = vmatpush1.msra.mxu0 %v124
    %171 = vmatprep.subr.mxu0 0.0
    %172 = vmatpush1.msra.mxu0 %v125
    %173 = vmatprep.subr.mxu0 0.0
    %174 = vmatpush1.msra.mxu0 %v126
    %175 = vmatprep.subr.mxu0 0.0
    %176 = vmatpush1.msra.mxu0 %v127
    %177 = vmatprep.subr.mxu0 0.0
    %178 = vmatpush1.msra.mxu0 0.0
    %179 = vmatprep.subr.mxu0 0.0
    %180 = vmatpush1.msra.mxu0 0.0
    %181 = vmatprep.subr.mxu0 0.0
    %182 = vmatpush1.msra.mxu0 0.0
    %183 = vmatprep.subr.mxu0 0.0
    %184 = vmatpush1.msra.mxu0 0.0
    %185 = vmatprep.subr.mxu0 0.0
    %186 = vmatpush1.msra.mxu0 0.0
    %187 = vmatprep.subr.mxu0 0.0
    %188 = vmatpush1.msra.mxu0 0.0
    %189 = vmatprep.subr.mxu0 0.0
    %190 = vmatpush1.msra.mxu0 0.0
    %191 = vmatprep.subr.mxu0 0.0
    %192 = vmatpush1.msra.mxu0 0.0
    %193 = vmatprep.subr.mxu0 0.0
    %194 = vmatpush1.msra.mxu0 0.0
    %195 = vmatprep.subr.mxu0 0.0
    %196 = vmatpush1.msra.mxu0 0.0
    %197 = vmatprep.subr.mxu0 0.0
    %198 = vmatpush1.msra.mxu0 0.0
    %199 = vmatprep.subr.mxu0 0.0
    %200 = vmatpush1.msra.mxu0 0.0
    %201 = vmatprep.subr.mxu0 0.0
    %202 = vmatpush1.msra.mxu0 0.0
    %203 = vmatprep.subr.mxu0 0.0
    %204 = vmatpush1.msra.mxu0 0.0
    %205 = vmatprep.subr.mxu0 0.0
    %206 = vmatpush1.msra.mxu0 0.0
    %207 = vmatprep.subr.mxu0 0.0
    %208 = vmatpush1.msra.mxu0 0.0
    %209 = vmatprep.subr.mxu0 0.0
    %210 = vmatpush1.msra.mxu0 0.0
    %211 = vmatprep.subr.mxu0 0.0
    %212 = vmatpush1.msra.mxu0 0.0
    %213 = vmatprep.subr.mxu0 0.0
    %214 = vmatpush1.msra.mxu0 0.0
    %215 = vmatprep.subr.mxu0 0.0
    %216 = vmatpush1.msra.mxu0 0.0
    %217 = vmatprep.subr.mxu0 0.0
    %218 = vmatpush1.msra.mxu0 0.0
    %219 = vmatprep.subr.mxu0 0.0
    %220 = vmatpush1.msra.mxu0 0.0
    %221 = vmatprep.subr.mxu0 0.0
    %222 = vmatpush1.msra.mxu0 0.0
    %223 = vmatprep.subr.mxu0 0.0
    %224 = vmatpush1.msra.mxu0 0.0
    %225 = vmatprep.subr.mxu0 0.0
    %226 = vmatpush1.msra.mxu0 0.0
    %227 = vmatprep.subr.mxu0 0.0
    %228 = vmatpush1.msra.mxu0 0.0
    %229 = vmatprep.subr.mxu0 0.0
    %230 = vmatpush1.msra.mxu0 0.0
    %231 = vmatprep.subr.mxu0 0.0
    %232 = vmatpush1.msra.mxu0 0.0
    %233 = vmatprep.mubr.f32.mxu0 0.0
    %234 = vmatmul.mubr.f32.gmra.mrb[0].mxu0 %v158
    %v235 = vpop.f32.mrb[0].mxu0
    %v236 = vadd.f32 %v139, %v235
    %v237 = vpop.f32.mrb[0].mxu0
    %238 = vmatprep.mubr.f32.mxu0 0.0
    %239 = vmatmul.mubr.f32.gmra.mrb[0].mxu0 %v161
    %v240 = vpop.f32.mrb[0].mxu0
    %v241 = vadd.f32 %v144, %v240
    %v242 = vpop.f32.mrb[0].mxu0
    %243 = vmatprep.mubr.f32.mxu0 0.0
    %244 = vmatmul.mubr.f32.gmra.mrb[0].mxu0 %v164
    %v245 = vpop.f32.mrb[0].mxu0
    %v246 = vadd.f32 %v149, %v245
    %v247 = vpop.f32.mrb[0].mxu0
    %248 = vmatprep.mubr.f32.mxu0 0.0
    %249 = vmatmul.mubr.f32.gmra.mrb[0].mxu0 %v167
    %v250 = vpop.f32.mrb[0].mxu0
    %v251 = vadd.f32 %v154, %v250
    %v252 = vpop.f32.mrb[0].mxu0
    %253 = vdwg.mxu0
    %v254 = vtanh.pop %v236
    %v255 = vtanh.pop %v241
    %v256 = vtanh.pop %v246
    %v257 = vtanh.pop %v251
    %v258 = vld [vmem:[%s5] sm:$0xff]
    %v259 = vld [vmem:[%s5 + $0x8] sm:$0xff]
    %v260 = vld [vmem:[%s5 + $0x10] sm:$0xff]
    %v261 = vld [vmem:[%s5 + $0x18] sm:$0xff]
    %v262 = vld [vmem:[%s6] sm:$0xff]
    %v263 = vld [vmem:[%s6 + $0x8] sm:$0xff]
    %v264 = vld [vmem:[%s6 + $0x10] sm:$0xff]
    %v265 = vld [vmem:[%s6 + $0x18] sm:$0xff]
    %267 = vset.pattern.permute.xlu0 0
    %268 = vperm.xlu0 %267, %v262
    %v269 = vpop.permute.xlu0 %268
    %272 = vset.pattern.permute.xlu0 0
    %273 = vperm.xlu0 %272, %v263
    %v274 = vpop.permute.xlu0 %273
    %277 = vset.pattern.permute.xlu0 0
    %278 = vperm.xlu0 %277, %v264
    %v279 = vpop.permute.xlu0 %278
    %282 = vset.pattern.permute.xlu0 0
    %283 = vperm.xlu0 %282, %v265
    %v284 = vpop.permute.xlu0 %283
    %v287 = vsel %vm156, %v258, 0
    %v290 = vsel %vm156, %v259, 0
    %v293 = vsel %vm156, %v260, 0
    %v296 = vsel %vm156, %v261, 0
    %298 = vmatprep.subr.mxu0 0.0
    %299 = vmatpush1.msra.mxu0 %v254
    %300 = vmatprep.subr.mxu0 0.0
    %301 = vmatpush1.msra.mxu0 %v255
    %302 = vmatprep.subr.mxu0 0.0
    %303 = vmatpush1.msra.mxu0 %v256
    %304 = vmatprep.subr.mxu0 0.0
    %305 = vmatpush1.msra.mxu0 %v257
    %306 = vmatprep.subr.mxu0 0.0
    %307 = vmatpush1.msra.mxu0 0.0
    %308 = vmatprep.subr.mxu0 0.0
    %309 = vmatpush1.msra.mxu0 0.0
    %310 = vmatprep.subr.mxu0 0.0
    %311 = vmatpush1.msra.mxu0 0.0
    %312 = vmatprep.subr.mxu0 0.0
    %313 = vmatpush1.msra.mxu0 0.0
    %314 = vmatprep.subr.mxu0 0.0
    %315 = vmatpush1.msra.mxu0 0.0
    %316 = vmatprep.subr.mxu0 0.0
    %317 = vmatpush1.msra.mxu0 0.0
    %318 = vmatprep.subr.mxu0 0.0
    %319 = vmatpush1.msra.mxu0 0.0
    %320 = vmatprep.subr.mxu0 0.0
    %321 = vmatpush1.msra.mxu0 0.0
    %322 = vmatprep.subr.mxu0 0.0
    %323 = vmatpush1.msra.mxu0 0.0
    %324 = vmatprep.subr.mxu0 0.0
    %325 = vmatpush1.msra.mxu0 0.0
    %326 = vmatprep.subr.mxu0 0.0
    %327 = vmatpush1.msra.mxu0 0.0
    %328 = vmatprep.subr.mxu0 0.0
    %329 = vmatpush1.msra.mxu0 0.0
    %330 = vmatprep.subr.mxu0 0.0
    %331 = vmatpush1.msra.mxu0 0.0
    %332 = vmatprep.subr.mxu0 0.0
    %333 = vmatpush1.msra.mxu0 0.0
    %334 = vmatprep.subr.mxu0 0.0
    %335 = vmatpush1.msra.mxu0 0.0
    %336 = vmatprep.subr.mxu0 0.0
    %337 = vmatpush1.msra.mxu0 0.0
    %338 = vmatprep.subr.mxu0 0.0
    %339 = vmatpush1.msra.mxu0 0.0
    %340 = vmatprep.subr.mxu0 0.0
    %341 = vmatpush1.msra.mxu0 0.0
    %342 = vmatprep.subr.mxu0 0.0
    %343 = vmatpush1.msra.mxu0 0.0
    %344 = vmatprep.subr.mxu0 0.0
    %345 = vmatpush1.msra.mxu0 0.0
    %346 = vmatprep.subr.mxu0 0.0
    %347 = vmatpush1.msra.mxu0 0.0
    %348 = vmatprep.subr.mxu0 0.0
    %349 = vmatpush1.msra.mxu0 0.0
    %350 = vmatprep.subr.mxu0 0.0
    %351 = vmatpush1.msra.mxu0 0.0
    %352 = vmatprep.subr.mxu0 0.0
    %353 = vmatpush1.msra.mxu0 0.0
    %354 = vmatprep.subr.mxu0 0.0
    %355 = vmatpush1.msra.mxu0 0.0
    %356 = vmatprep.subr.mxu0 0.0
    %357 = vmatpush1.msra.mxu0 0.0
    %358 = vmatprep.subr.mxu0 0.0
    %359 = vmatpush1.msra.mxu0 0.0
    %360 = vmatprep.subr.mxu0 0.0
    %361 = vmatpush1.msra.mxu0 0.0
    %362 = vmatprep.mubr.f32.mxu0 0.0
    %363 = vmatmul.mubr.f32.gmra.mrb[0].mxu0 %v287
    %v364 = vpop.f32.mrb[0].mxu0
    %v365 = vadd.f32 %v269, %v364
    %v366 = vpop.f32.mrb[0].mxu0
    %367 = vmatprep.mubr.f32.mxu0 0.0
    %368 = vmatmul.mubr.f32.gmra.mrb[0].mxu0 %v290
    %v369 = vpop.f32.mrb[0].mxu0
    %v370 = vadd.f32 %v274, %v369
    %v371 = vpop.f32.mrb[0].mxu0
    %372 = vmatprep.mubr.f32.mxu0 0.0
    %373 = vmatmul.mubr.f32.gmra.mrb[0].mxu0 %v293
    %v374 = vpop.f32.mrb[0].mxu0
    %v375 = vadd.f32 %v279, %v374
    %v376 = vpop.f32.mrb[0].mxu0
    %377 = vmatprep.mubr.f32.mxu0 0.0
    %378 = vmatmul.mubr.f32.gmra.mrb[0].mxu0 %v296
    %v379 = vpop.f32.mrb[0].mxu0
    %v380 = vadd.f32 %v284, %v379
    %v381 = vpop.f32.mrb[0].mxu0
    %382 = vdwg.mxu0
    %v383 = vtanh.pop %v365
    %v384 = vtanh.pop %v370
    %v385 = vtanh.pop %v375
    %v386 = vtanh.pop %v380
    %v387 = vld [vmem:[%s7] sm:$0x1]
    %v388 = vld [vmem:[#allocation2] sm:$0x1]
    %390 = vset.pattern.permute.xlu0 0
    %391 = vperm.xlu0 %390, %v388
    %v392 = vpop.permute.xlu0 %391
    %v394 = vlaneseq
    %v395 = vshrl.u32 %v394, 7
    %v396 = vsub.s32 0, %v395
    %v397 = vrot.slane %v392, %v396
    %v399 = vsel %vm156, %v387, 0
    %401 = vmatprep.subr.mxu0 0.0
    %402 = vmatpush1.msra.mxu0 %v383
    %403 = vmatprep.subr.mxu0 0.0
    %404 = vmatpush1.msra.mxu0 %v384
    %405 = vmatprep.subr.mxu0 0.0
    %406 = vmatpush1.msra.mxu0 %v385
    %407 = vmatprep.subr.mxu0 0.0
    %408 = vmatpush1.msra.mxu0 %v386
    %409 = vmatprep.subr.mxu0 0.0
    %410 = vmatpush1.msra.mxu0 0.0
    %411 = vmatprep.subr.mxu0 0.0
    %412 = vmatpush1.msra.mxu0 0.0
    %413 = vmatprep.subr.mxu0 0.0
    %414 = vmatpush1.msra.mxu0 0.0
    %415 = vmatprep.subr.mxu0 0.0
    %416 = vmatpush1.msra.mxu0 0.0
    %417 = vmatprep.subr.mxu0 0.0
    %418 = vmatpush1.msra.mxu0 0.0
    %419 = vmatprep.subr.mxu0 0.0
    %420 = vmatpush1.msra.mxu0 0.0
    %421 = vmatprep.subr.mxu0 0.0
    %422 = vmatpush1.msra.mxu0 0.0
    %423 = vmatprep.subr.mxu0 0.0
    %424 = vmatpush1.msra.mxu0 0.0
    %425 = vmatprep.subr.mxu0 0.0
    %426 = vmatpush1.msra.mxu0 0.0
    %427 = vmatprep.subr.mxu0 0.0
    %428 = vmatpush1.msra.mxu0 0.0
    %429 = vmatprep.subr.mxu0 0.0
    %430 = vmatpush1.msra.mxu0 0.0
    %431 = vmatprep.subr.mxu0 0.0
    %432 = vmatpush1.msra.mxu0 0.0
    %433 = vmatprep.subr.mxu0 0.0
    %434 = vmatpush1.msra.mxu0 0.0
    %435 = vmatprep.subr.mxu0 0.0
    %436 = vmatpush1.msra.mxu0 0.0
    %437 = vmatprep.subr.mxu0 0.0
    %438 = vmatpush1.msra.mxu0 0.0
    %439 = vmatprep.subr.mxu0 0.0
    %440 = vmatpush1.msra.mxu0 0.0
    %441 = vmatprep.subr.mxu0 0.0
    %442 = vmatpush1.msra.mxu0 0.0
    %443 = vmatprep.subr.mxu0 0.0
    %444 = vmatpush1.msra.mxu0 0.0
    %445 = vmatprep.subr.mxu0 0.0
    %446 = vmatpush1.msra.mxu0 0.0
    %447 = vmatprep.subr.mxu0 0.0
    %448 = vmatpush1.msra.mxu0 0.0
    %449 = vmatprep.subr.mxu0 0.0
    %450 = vmatpush1.msra.mxu0 0.0
    %451 = vmatprep.subr.mxu0 0.0
    %452 = vmatpush1.msra.mxu0 0.0
    %453 = vmatprep.subr.mxu0 0.0
    %454 = vmatpush1.msra.mxu0 0.0
    %455 = vmatprep.subr.mxu0 0.0
    %456 = vmatpush1.msra.mxu0 0.0
    %457 = vmatprep.subr.mxu0 0.0
    %458 = vmatpush1.msra.mxu0 0.0
    %459 = vmatprep.subr.mxu0 0.0
    %460 = vmatpush1.msra.mxu0 0.0
    %461 = vmatprep.subr.mxu0 0.0
    %462 = vmatpush1.msra.mxu0 0.0
    %463 = vmatprep.subr.mxu0 0.0
    %464 = vmatpush1.msra.mxu0 0.0
    %465 = vmatprep.mubr.f32.mxu0 0.0
    %466 = vmatmul.mubr.f32.gmra.mrb[0].mxu0 %v399
    %v467 = vpop.f32.mrb[0].mxu0
    %v468 = vadd.f32 %v397, %v467
    %v469 = vpop.f32.mrb[0].mxu0
    %470 = vdwg.mxu0
    %471 = vst [vmem:[#allocation3] sm:$0x1] %v468
    // Predicated region
    $region38: #{tpu_custom_call.1} parent=1 // pred_check
      _
    $region39: #{tpu_custom_call.1} parent=1 // pred_check_branch
      %473 = sbr.rel (0) target = $region41
    $region40: #{tpu_custom_call.1} parent=1 // pred_region
      %s475 = ssub.s32 16, 16
      %476 = vsyncadd [#allocation4], %s475
      %s478 = sshll.u32 [#allocation3], 4
      %s479 = int_to_ptr.vmem [resolvable:$true] %s478
      %481 = dma.vmem_to_hbm [thread:$0]  %s479, 16, %s9, [#allocation4]
    $region41: #{tpu_custom_call.1} parent=1 // pred_fallthru
      _
    // Predicated region
    $region42: #{tpu_custom_call.1} parent=1 // pred_check
      _
    $region43: #{tpu_custom_call.1} parent=1 // pred_check_branch
      %483 = sbr.rel (0) target = $region45
    $region44: #{tpu_custom_call.1} parent=1 // pred_region
      %484 = dma.done [#allocation4], 16
    $region45: #{tpu_custom_call.1} parent=1 // pred_fallthru
      _
    %485 = vsyncpa [#allocation4], 1

</llo_original>
